<compile_context>
chip_gen: v6e
topology: v6e:2x2x1
jax: 0.10.0
libtpu: 0.0.40
codegen_flags: <defaults>
</compile_context>

<pallas_src>
import jax
import jax.numpy as jnp
from jax.experimental import pallas as pl
from jax.experimental.pallas import tpu as pltpu


def _round_up(x, m):
    return ((x + m - 1) // m) * m


def _embed_kernel(p_ref, w_ref, b_ref, o_ref):
    # p_ref: (tm, K)   w_ref: (K, C_out)   b_ref: (1, C_out)   o_ref: (tm, C_out)
    p = p_ref[...].astype(jnp.float32)
    w = w_ref[...].astype(jnp.float32)
    b = b_ref[...].astype(jnp.float32)
    k = p.shape[1]
    if k <= 32:
        # Tiny contraction depth: K broadcast multiply-adds on the VPU.  The MXU
        # (128/256 wide) would be mostly idle at this depth and the VPU work is
        # entirely hidden under the output-store DMA in this mem-bound kernel.
        acc = p[:, 0:1] * w[0:1, :]
        for t in range(1, k):
            acc = acc + p[:, t:t + 1] * w[t:t + 1, :]
    else:
        acc = jnp.dot(p, w, preferred_element_type=jnp.float32)
    o_ref[...] = jnp.maximum(acc + b, 0.0).astype(o_ref.dtype)   # bias + ReLU epilogue


def embedding_forward(x, weight, bias, *, kernel_size=3, stride=3, padding=1,
                      out_dtype=None):
    """x: (N, C_in, L), weight: (C_out, C_in, Ksz), bias: (C_out,).
    Returns (N, L_out, C_out) == PyTorch conv1d+bias+relu output permuted (0,2,1)."""
    n, c_in, length = x.shape
    c_out = weight.shape[0]
    l_out = (length + 2 * padding - kernel_size) // stride + 1
    m = n * l_out
    k = c_in * kernel_size
    out_dtype = x.dtype if out_dtype is None else out_dtype

    # --- im2col (indexing only, no FLOPs) ---
    x_pad = jnp.pad(x, ((0, 0), (0, 0), (padding, padding)))
    if stride == kernel_size and l_out * kernel_size <= length + 2 * padding:
        if c_in == 1:
            # Non-overlapping windows, single channel: pure slice + reshape.
            patches = x_pad[:, 0, : l_out * kernel_size].reshape(m, k)
        else:
            patches = x_pad[:, :, : l_out * kernel_size]
            patches = patches.reshape(n, c_in, l_out, kernel_size)
            patches = jnp.transpose(patches, (0, 2, 1, 3)).reshape(m, k)
    else:
        # Fallback for overlapping strides (gather).
        starts = jnp.arange(l_out) * stride
        idx = starts[:, None] + jnp.arange(kernel_size)[None, :]      # (L_out, Ksz)
        patches = x_pad[:, :, idx]                                     # (N, C_in, L_out, Ksz)
        patches = jnp.transpose(patches, (0, 2, 1, 3)).reshape(m, k)

    w_mat = weight.reshape(c_out, k).T                                 # (K, C_out)
    b_row = bias.reshape(1, c_out)                                     # (1, C_out)

    # --- tile M: large tiles amortize per-step overhead; keep >=2 grid steps so a
    #     2-TensorCore chip (v7x) can split the parallel axis across cores. ---
    m_pad8 = _round_up(max(m, 1), 8)
    if m_pad8 > 8:
        tm = min(2048, _round_up(pl.cdiv(m_pad8, 2), 8))
    else:
        tm = m_pad8
    m_pad = _round_up(m, tm)
    grid = (m_pad // tm,)

    if m_pad != m:
        patches = jnp.pad(patches, ((0, m_pad - m), (0, 0)))

    cost = pl.CostEstimate(
        flops=2 * m_pad * k * c_out,
        transcendentals=0,
        bytes_accessed=4 * (m_pad * k + k * c_out + c_out)
        + jnp.dtype(out_dtype).itemsize * m_pad * c_out,
    )

    out = pl.pallas_call(
        _embed_kernel,
        out_shape=jax.ShapeDtypeStruct((m_pad, c_out), out_dtype),
        grid=grid,
        in_specs=[
            pl.BlockSpec((tm, k), lambda i: (i, 0)),        # patch tiles stream over M
            pl.BlockSpec((k, c_out), lambda i: (0, 0)),     # weights stay resident
            pl.BlockSpec((1, c_out), lambda i: (0, 0)),     # bias stays resident
        ],
        out_specs=pl.BlockSpec((tm, c_out), lambda i: (i, 0)),
        compiler_params=pltpu.CompilerParams(
            dimension_semantics=("parallel",)),
        cost_estimate=cost,
    )(patches, w_mat, b_row)

    if m_pad != m:
        out = out[:m]
    return out.reshape(n, l_out, c_out)


if __name__ == "__main__":
    key = jax.random.PRNGKey(0)
    kx, kw, kb = jax.random.split(key, 3)

    # small shapes consistent with the module defaults
    N, C_IN, L = 2, 1, 48          # input_channel = 1
    C_OUT, KSZ, PAD = 50, 3, 1     # embedding_c = 50, kernel_size = 3, padding = 1
    STRIDE = KSZ - 0               # overlap = 0  ->  stride = kernel_size

    x = jax.random.normal(kx, (N, C_IN, L), dtype=jnp.float32)

    # deterministic parameter init (uniform(-1/sqrt(fan_in), 1/sqrt(fan_in)), like PyTorch default)
    fan_in = C_IN * KSZ
    bound = 1.0 / (fan_in ** 0.5)
    weight = jax.random.uniform(kw, (C_OUT, C_IN, KSZ), minval=-bound, maxval=bound,
                                dtype=jnp.float32)
    bias = jax.random.uniform(kb, (C_OUT,), minval=-bound, maxval=bound,
                              dtype=jnp.float32)

    y = embedding_forward(x, weight, bias, kernel_size=KSZ, stride=STRIDE, padding=PAD)
    y = jax.block_until_ready(y)

    # reference (plain JAX) check
    ref = jax.lax.conv_general_dilated(
        x, weight, window_strides=(STRIDE,), padding=[(PAD, PAD)],
        dimension_numbers=("NCH", "OIH", "NCH"))
    ref = jnp.maximum(ref + bias[None, :, None], 0.0).transpose(0, 2, 1)

    L_OUT = (L + 2 * PAD - KSZ) // STRIDE + 1
    assert y.shape == (N, L_OUT, C_OUT), y.shape
    assert jnp.allclose(y, ref, atol=1e-5), float(jnp.max(jnp.abs(y - ref)))
    print("KERNEL_OK")
</pallas_src>

<mosaic_0001>
module attributes {stable_mosaic.version = 11 : i64} {
  func.func @_embed_kernel(%arg0: i32, %arg1: memref<16x3xf32, #tpu.memory_space<vmem>>, %arg2: memref<3x50xf32, #tpu.memory_space<vmem>>, %arg3: memref<1x50xf32, #tpu.memory_space<vmem>>, %arg4: memref<16x50xf32, #tpu.memory_space<vmem>>) attributes {dimension_semantics = [#tpu.dimension_semantics<parallel>], iteration_bounds = array<i64: 2>, scalar_prefetch = 0 : i64, scratch_operands = 0 : i64, tpu.core_type = #tpu.core_type<tc>, window_params = [{transform_indices = @transform_0, window_bounds = array<i64: 16, 3>}, {pipeline_mode = #tpu.pipeline_mode<synchronous>, transform_indices = @transform_1, window_bounds = array<i64: 3, 50>}, {pipeline_mode = #tpu.pipeline_mode<synchronous>, transform_indices = @transform_2, window_bounds = array<i64: 1, 50>}, {transform_indices = @transform_3, window_bounds = array<i64: 16, 50>}]} {
    %c0 = arith.constant 0 : index
    %c0_0 = arith.constant 0 : index
    %0 = vector.load %arg1[%c0, %c0_0] : memref<16x3xf32, #tpu.memory_space<vmem>>, vector<16x3xf32>
    %c0_1 = arith.constant 0 : index
    %c0_2 = arith.constant 0 : index
    %1 = vector.load %arg2[%c0_1, %c0_2] : memref<3x50xf32, #tpu.memory_space<vmem>>, vector<3x50xf32>
    %c0_3 = arith.constant 0 : index
    %c0_4 = arith.constant 0 : index
    %2 = vector.load %arg3[%c0_3, %c0_4] : memref<1x50xf32, #tpu.memory_space<vmem>>, vector<1x50xf32>
    %3 = vector.extract_strided_slice %0 {offsets = [0, 0], sizes = [16, 1], strides = [1, 1]} : vector<16x3xf32> to vector<16x1xf32>
    %4 = vector.extract_strided_slice %1 {offsets = [0, 0], sizes = [1, 50], strides = [1, 1]} : vector<3x50xf32> to vector<1x50xf32>
    %5 = vector.broadcast %3 : vector<16x1xf32> to vector<16x50xf32>
    %6 = vector.broadcast %4 : vector<1x50xf32> to vector<16x50xf32>
    %7 = arith.mulf %5, %6 : vector<16x50xf32>
    %8 = vector.extract_strided_slice %0 {offsets = [0, 1], sizes = [16, 1], strides = [1, 1]} : vector<16x3xf32> to vector<16x1xf32>
    %9 = vector.extract_strided_slice %1 {offsets = [1, 0], sizes = [1, 50], strides = [1, 1]} : vector<3x50xf32> to vector<1x50xf32>
    %10 = vector.broadcast %8 : vector<16x1xf32> to vector<16x50xf32>
    %11 = vector.broadcast %9 : vector<1x50xf32> to vector<16x50xf32>
    %12 = arith.mulf %10, %11 : vector<16x50xf32>
    %13 = arith.addf %7, %12 : vector<16x50xf32>
    %14 = vector.extract_strided_slice %0 {offsets = [0, 2], sizes = [16, 1], strides = [1, 1]} : vector<16x3xf32> to vector<16x1xf32>
    %15 = vector.extract_strided_slice %1 {offsets = [2, 0], sizes = [1, 50], strides = [1, 1]} : vector<3x50xf32> to vector<1x50xf32>
    %16 = vector.broadcast %14 : vector<16x1xf32> to vector<16x50xf32>
    %17 = vector.broadcast %15 : vector<1x50xf32> to vector<16x50xf32>
    %18 = arith.mulf %16, %17 : vector<16x50xf32>
    %19 = arith.addf %13, %18 : vector<16x50xf32>
    %20 = vector.broadcast %2 : vector<1x50xf32> to vector<16x50xf32>
    %21 = arith.addf %19, %20 : vector<16x50xf32>
    %cst = arith.constant 0.000000e+00 : f32
    %22 = vector.broadcast %cst : f32 to vector<16x50xf32>
    %23 = arith.maximumf %21, %22 : vector<16x50xf32>
    %c0_5 = arith.constant 0 : index
    %c0_6 = arith.constant 0 : index
    %24 = vector.load %arg4[%c0_5, %c0_6] : memref<16x50xf32, #tpu.memory_space<vmem>>, vector<16x50xf32>
    tpu.vector_store %arg4[%c0_5, %c0_6], %23 {strides = array<i32>} : memref<16x50xf32, #tpu.memory_space<vmem>>, vector<16x50xf32>,
    return
  }
  func.func @transform_0(%arg0: i32) -> (i32, i32) {
    %c0_i32 = arith.constant 0 : i32
    %c0_i32_0 = arith.constant 0 : i32
    return %arg0, %c0_i32 : i32, i32
  }
  func.func @transform_1(%arg0: i32) -> (i32, i32) {
    %c0_i32 = arith.constant 0 : i32
    %c0_i32_0 = arith.constant 0 : i32
    %c0_i32_1 = arith.constant 0 : i32
    return %c0_i32, %c0_i32_0 : i32, i32
  }
  func.func @transform_2(%arg0: i32) -> (i32, i32) {
    %c0_i32 = arith.constant 0 : i32
    %c0_i32_0 = arith.constant 0 : i32
    %c0_i32_1 = arith.constant 0 : i32
    return %c0_i32, %c0_i32_0 : i32, i32
  }
  func.func @transform_3(%arg0: i32) -> (i32, i32) {
    %c0_i32 = arith.constant 0 : i32
    %c0_i32_0 = arith.constant 0 : i32
    return %arg0, %c0_i32 : i32, i32
  }
}

</mosaic_0001>

<llo_original>
// kernel: tpu_custom_call.1
$region0: #{tpu_custom_call.1}
  #allocation0 [shape = 'u32[]', space=smem, size = 0x4, offset = 0x4, fixed_abs, tag = 'smem constant byte address 0x4 - core index']
  #allocation1 [shape = 'u32[144,128]{1,0:T(1,128)}', space=vmem, size = 0x12000, scoped, tag = 'internal scratch']
  %s0 = inlined_call_operand.vmem [shape: f32[32,3], index: 0, kind: input, shape index: {}]
  %s1 = inlined_call_operand.vmem [shape: f32[3,50], index: 1, kind: input, shape index: {}]
  %s2 = inlined_call_operand.vmem [shape: f32[1,50], index: 2, kind: input, shape index: {}]
  %s3 = inlined_call_operand.hbm [shape: f32[32,50], index: 3, kind: output, shape index: {}]
  %s4 = sld [smem:[#allocation0]]
  $region45: #{tpu_custom_call.1} parent=0
    _
  %s6 = ssub.s32 1, %s4
  %s7 = scalar_select 0, %s6, %s4
  $region1: #{tpu_custom_call.1} parent=0
    #allocation2 [shape = 'u8[16384]{0}', space=vmem, size = 0x4000, scoped, tag = 'output window, operand 0']
    #allocation3 [shape = 's32[2]{0}', space=sflag, size = 0x8, scoped, tag = 'scoped memory for tpu_custom_call.1']
    %8 = vsyncpa [#allocation3], 0
    %s9 = scalar_lea.sflag [#allocation3], 1
    %10 = vsyncpa %s9, 0
    loop: start=0, step=1, limit=4
    $region2: #{tpu_custom_call.1} parent=1 // loop_pre_header
      _
    $region3: #{tpu_custom_call.1} parent=1 // loop_header
      %s12 = sphi 0, %s16
      %p13 = scmp.ge.s32.totalorder %s12, 4
      %s22 = sphi 0, %s24
      %s25 = sphi 0, %s22
      %s26 = sphi 0, %s25
      %s42 = sphi 0, %s26
      %s46 = sphi 0, %s46
      %s48 = sphi 0, %s46
      %s49 = sphi 0, %s48
      %s63 = sphi 0, %s49
      %s67 = sphi 0, %s67
      %s69 = sphi 0, %s67
      %s70 = sphi 0, %s69
      %s84 = sphi 0, %s70
      %s90 = sphi 0, %s92
      %s93 = sphi 0, %s90
      %s94 = sphi 0, %s93
      %s110 = sphi 0, %s94
    $region4: #{tpu_custom_call.1} parent=1 // loop_header_branch
      %15 = sbr.rel (%p13) target = $region8
    $region5: #{tpu_custom_call.1} parent=1 // loop_body
      %s17 = ssub.s32 %s12, 1
      %s18 = ssub.s32 %s12, 2
      %s19 = sadd.s32 %s12, 1
      %s20 = ssub.s32 %s12, %s19
      %p21 = scmp.eq.s32.totalorder %s20, 0
      %s23 = sadd.s32 %s22, 1
      %s24 = scalar_select %p21, %s22, %s23
      %p27 = pneg %p21
      %p28 = scmp.eq.s32.totalorder %s12, 1
      %p29 = por %p27, %p28
      %p30 = scmp.ne.s32.totalorder %s22, %s25
      %p31 = scmp.eq.s32.totalorder %s12, 0
      %p32 = por %p30, %p31
      %p33 = scmp.ne.s32.totalorder %s22, %s25
      %p34 = scmp.eq.s32.totalorder %s17, 1
      %p35 = por %p33, %p34
      %p36 = scmp.ne.s32.totalorder %s25, %s26
      %p37 = scmp.eq.s32.totalorder %s17, 0
      %p38 = por %p36, %p37
      %p39 = scmp.ne.s32.totalorder %s25, %s26
      %p40 = scmp.eq.s32.totalorder %s18, 1
      %p41 = por %p39, %p40
      %p43 = scmp.ne.s32.totalorder %s26, %s42
      %p44 = scmp.eq.s32.totalorder %s18, 0
      %p45 = por %p43, %p44
      %s47 = sadd.s32 %s46, 1
      %p50 = scmp.eq.s32.totalorder %s12, 1
      %p51 = scmp.ne.s32.totalorder %s46, %s48
      %p52 = scmp.eq.s32.totalorder %s12, 0
      %p53 = por %p51, %p52
      %p54 = scmp.ne.s32.totalorder %s46, %s48
      %p55 = scmp.eq.s32.totalorder %s17, 1
      %p56 = por %p54, %p55
      %p57 = scmp.ne.s32.totalorder %s48, %s49
      %p58 = scmp.eq.s32.totalorder %s17, 0
      %p59 = por %p57, %p58
      %p60 = scmp.ne.s32.totalorder %s48, %s49
      %p61 = scmp.eq.s32.totalorder %s18, 1
      %p62 = por %p60, %p61
      %p64 = scmp.ne.s32.totalorder %s49, %s63
      %p65 = scmp.eq.s32.totalorder %s18, 0
      %p66 = por %p64, %p65
      %s68 = sadd.s32 %s67, 1
      %p71 = scmp.eq.s32.totalorder %s12, 1
      %p72 = scmp.ne.s32.totalorder %s67, %s69
      %p73 = scmp.eq.s32.totalorder %s12, 0
      %p74 = por %p72, %p73
      %p75 = scmp.ne.s32.totalorder %s67, %s69
      %p76 = scmp.eq.s32.totalorder %s17, 1
      %p77 = por %p75, %p76
      %p78 = scmp.ne.s32.totalorder %s69, %s70
      %p79 = scmp.eq.s32.totalorder %s17, 0
      %p80 = por %p78, %p79
      %p81 = scmp.ne.s32.totalorder %s69, %s70
      %p82 = scmp.eq.s32.totalorder %s18, 1
      %p83 = por %p81, %p82
      %p85 = scmp.ne.s32.totalorder %s70, %s84
      %p86 = scmp.eq.s32.totalorder %s18, 0
      %p87 = por %p85, %p86
      %s88 = ssub.s32 %s12, %s19
      %p89 = scmp.eq.s32.totalorder %s88, 0
      %s91 = sadd.s32 %s90, 1
      %s92 = scalar_select %p89, %s90, %s91
      %p95 = pneg %p89
      %p96 = scmp.eq.s32.totalorder %s12, 1
      %p97 = por %p95, %p96
      %p98 = scmp.ne.s32.totalorder %s90, %s93
      %p99 = scmp.eq.s32.totalorder %s12, 0
      %p100 = por %p98, %p99
      %p101 = scmp.ne.s32.totalorder %s90, %s93
      %p102 = scmp.eq.s32.totalorder %s17, 1
      %p103 = por %p101, %p102
      %p104 = scmp.ne.s32.totalorder %s93, %s94
      %p105 = scmp.eq.s32.totalorder %s17, 0
      %p106 = por %p104, %p105
      %p107 = scmp.ne.s32.totalorder %s93, %s94
      %p108 = scmp.eq.s32.totalorder %s18, 1
      %p109 = por %p107, %p108
      %p111 = scmp.ne.s32.totalorder %s94, %s110
      %p112 = scmp.eq.s32.totalorder %s18, 0
      %p113 = por %p111, %p112
      %p114 = scmp.le.s32.totalorder 1, %s12
      %p115 = scmp.lt.s32.totalorder %s12, 3
      %p116 = pnand %p114, %p115
      %p117 = pneg %p116
      // Predicated region
      $region9: #{tpu_custom_call.1} parent=5 // pred_check
        _
      $region10: #{tpu_custom_call.1} parent=5 // pred_check_branch
        %119 = sbr.rel (%p116) target = $region12
      $region11: #{tpu_custom_call.1} parent=5 // pred_region
        %s120 = ssub.s32 %s12, 1
        // Predicated region
        $region13: #{tpu_custom_call.1} parent=11 // pred_check
          %p121 = pneg %p59
        $region14: #{tpu_custom_call.1} parent=11 // pred_check_branch
          %123 = sbr.rel (%p121) target = $region16
        $region15: #{tpu_custom_call.1} parent=11 // pred_region
          _
        $region16: #{tpu_custom_call.1} parent=11 // pred_fallthru
          _
        // Predicated region
        $region17: #{tpu_custom_call.1} parent=11 // pred_check
          %p124 = pneg %p80
        $region18: #{tpu_custom_call.1} parent=11 // pred_check_branch
          %126 = sbr.rel (%p124) target = $region20
        $region19: #{tpu_custom_call.1} parent=11 // pred_region
          _
        $region20: #{tpu_custom_call.1} parent=11 // pred_fallthru
          _
      $region12: #{tpu_custom_call.1} parent=5 // pred_fallthru
        _
      %p127 = scmp.lt.s32.totalorder %s12, 2
      // Predicated region
      $region21: #{tpu_custom_call.1} parent=5 // pred_check
        %p128 = pneg %p127
      $region22: #{tpu_custom_call.1} parent=5 // pred_check_branch
        %130 = sbr.rel (%p128) target = $region24
      $region23: #{tpu_custom_call.1} parent=5 // pred_region
        // Predicated region
        $region25: #{tpu_custom_call.1} parent=23 // pred_check
          %p131 = pneg %p32
        $region26: #{tpu_custom_call.1} parent=23 // pred_check_branch
          %133 = sbr.rel (%p131) target = $region28
        $region27: #{tpu_custom_call.1} parent=23 // pred_region
          %s134 = smul.u32 2, %s12
          %p135 = scmp.lt.s32.totalorder %s134, 3
          %s136 = scalar_select %p135, %s134, 3
          %s137 = smul.addr %s136, 8
          %s138 = scalar_lea.vmem %s0, %s137
          %s139 = smul.u32 2, %s12
        $region28: #{tpu_custom_call.1} parent=23 // pred_fallthru
          _
      $region24: #{tpu_custom_call.1} parent=5 // pred_fallthru
        _
      %p140 = scmp.le.s32.totalorder 1, %s12
      %p141 = scmp.lt.s32.totalorder %s12, 3
      %p142 = pnand %p140, %p141
      %p143 = pneg %p142
      // Predicated region
      $region29: #{tpu_custom_call.1} parent=5 // pred_check
        _
      $region30: #{tpu_custom_call.1} parent=5 // pred_check_branch
        %145 = sbr.rel (%p142) target = $region32
      $region31: #{tpu_custom_call.1} parent=5 // pred_region
        %s146 = ssub.s32 %s12, 1
        %s147 = smul.u32 2, %s17
        %p148 = scmp.lt.s32.totalorder %s147, 3
        %s149 = scalar_select %p148, %s147, 3
        %s150 = smul.addr %s149, 8
        %s151 = scalar_lea.vmem %s0, %s150
        %p152 = pneg %p38
        %p153 = pneg %p35
        %p154 = pneg %p59
        %p155 = pneg %p56
        %p156 = pneg %p80
        %p157 = pneg %p77
        %p158 = pneg %p106
        %p159 = pneg %p103
        %s160 = sand.u32 %s93, 1
        %s161 = scalar_lea.sflag [#allocation3], %s160
        %s162 = sand.u32 %s93, 1
        %s163 = smul.addr %s162, 16
        %s164 = scalar_lea.vmem [#allocation2], %s163
        %s165 = smul.u32 2, %s17
        %p166 = scmp.lt.s32.totalorder %s165, 3
        %s167 = scalar_select %p166, %s165, 3
        %s168 = smul.addr %s167, 8
        %s169 = scalar_lea.vmem %s0, %s168
        %s170 = smul.u32 2, %s17
        %s171 = smul.u32 2, %s17
        %v172 = vld [vmem:[%s169] sm:$0xff]
        %v173 = vld [vmem:[%s169 + $0x8] sm:$0xff]
        %v174 = vld [vmem:[%s1] sm:$0x7]
        %v175 = vld [vmem:[%s2] sm:$0x1]
        %177 = vset.pattern.permute.xlu0 0
        %178 = vperm.xlu0 %177, %v172
        %v179 = vpop.permute.xlu0 %178
        %182 = vset.pattern.permute.xlu0 0
        %183 = vperm.xlu0 %182, %v173
        %v184 = vpop.permute.xlu0 %183
        %v186 = vlaneseq
        %v187 = vshrl.u32 %v186, 7
        %v188 = vsub.s32 0, %v187
        %v189 = vrot.slane %v174, %v188
        %v190 = vmul.f32 %v179, %v189
        %v191 = vmul.f32 %v184, %v189
        %192 = vset.pattern.permute.xlu0 1
        %193 = vperm.xlu0 %192, %v172
        %v194 = vpop.permute.xlu0 %193
        %196 = vset.pattern.permute.xlu0 1
        %197 = vperm.xlu0 %196, %v173
        %v198 = vpop.permute.xlu0 %197
        %v200 = vlaneseq
        %v201 = vshrl.u32 %v200, 7
        %v202 = vsub.s32 1, %v201
        %v203 = vrot.slane %v174, %v202
        %v204 = vmul.f32 %v194, %v203
        %v205 = vmul.f32 %v198, %v203
        %v206 = vadd.f32 %v190, %v204
        %v207 = vadd.f32 %v191, %v205
        %208 = vset.pattern.permute.xlu0 2
        %209 = vperm.xlu0 %208, %v172
        %v210 = vpop.permute.xlu0 %209
        %212 = vset.pattern.permute.xlu0 2
        %213 = vperm.xlu0 %212, %v173
        %v214 = vpop.permute.xlu0 %213
        %v216 = vlaneseq
        %v217 = vshrl.u32 %v216, 7
        %v218 = vsub.s32 2, %v217
        %v219 = vrot.slane %v174, %v218
        %v220 = vmul.f32 %v210, %v219
        %v221 = vmul.f32 %v214, %v219
        %v222 = vadd.f32 %v206, %v220
        %v223 = vadd.f32 %v207, %v221
        %v225 = vlaneseq
        %v226 = vshrl.u32 %v225, 7
        %v227 = vsub.s32 0, %v226
        %v228 = vrot.slane %v175, %v227
        %v230 = vadd.f32 %v222, %v228
        %v231 = vadd.f32 %v223, %v228
        %v232 = vmax.f32 %v230, 0.0
        %v233 = vmax.f32 %v231, 0.0
        %vm234 = vcmask 408576
        %235 = vst.msk [vmem:[%s164] sm:$0xff] %vm234, %v232
        %236 = vst.msk [vmem:[%s164 + $0x8] sm:$0xff] %vm234, %v233
        %s237 = sand.u32 %s93, 1
        %s238 = scalar_lea.sflag [#allocation3], %s237
        %s239 = sand.u32 %s93, 1
        %s240 = smul.addr %s239, 16
        %s241 = scalar_lea.vmem [#allocation2], %s240
        // Predicated region
        $region33: #{tpu_custom_call.1} parent=31 // pred_check
          %p242 = pneg %p103
        $region34: #{tpu_custom_call.1} parent=31 // pred_check_branch
          %244 = sbr.rel (%p242) target = $region36
        $region35: #{tpu_custom_call.1} parent=31 // pred_region
          %s245 = smul.u32 2, %s17
          %s247 = ssub.s32 256, 256
          %248 = vsyncadd %s238, %s247
          %s249 = smul.addr %s245, 128
          %s250 = scalar_lea.hbm %s3, %s249
          %s251 = sshll.u32 %s241, 4
          %s252 = int_to_ptr.vmem [resolvable:$true] %s251
          %257 = dma.vmem_to_hbm [thread:$0]  %s252, 256, %s250, %s238, 128, 128, 8
        $region36: #{tpu_custom_call.1} parent=31 // pred_fallthru
          _
      $region32: #{tpu_custom_call.1} parent=5 // pred_fallthru
        _
      %p258 = scmp.le.s32.totalorder 2, %s12
      // Predicated region
      $region37: #{tpu_custom_call.1} parent=5 // pred_check
        %p259 = pneg %p258
      $region38: #{tpu_custom_call.1} parent=5 // pred_check_branch
        %261 = sbr.rel (%p259) target = $region40
      $region39: #{tpu_custom_call.1} parent=5 // pred_region
        %s262 = ssub.s32 %s12, 2
        // Predicated region
        $region41: #{tpu_custom_call.1} parent=39 // pred_check
          %p263 = pneg %p109
        $region42: #{tpu_custom_call.1} parent=39 // pred_check_branch
          %265 = sbr.rel (%p263) target = $region44
        $region43: #{tpu_custom_call.1} parent=39 // pred_region
          %s266 = sand.u32 %s94, 1
          %s267 = scalar_lea.sflag [#allocation3], %s266
          %s268 = sand.u32 %s94, 1
          %s269 = smul.addr %s268, 16
          %s270 = scalar_lea.vmem [#allocation2], %s269
          %271 = dma.done %s267, 256
        $region44: #{tpu_custom_call.1} parent=39 // pred_fallthru
          _
      $region40: #{tpu_custom_call.1} parent=5 // pred_fallthru
        _
    $region6: #{tpu_custom_call.1} parent=1 // loop_footer
      %s16 = sadd.s32 1, %s12
    $region7: #{tpu_custom_call.1} parent=1 // loop_footer_branch
      %11 = sbr.rel target = $region3
    $region8: #{tpu_custom_call.1} parent=1 // loop_exit
      _
    %272 = vsyncpa [#allocation3], 1
    %s273 = scalar_lea.sflag [#allocation3], 1
    %274 = vsyncpa %s273, 1

</llo_original>
